<compile_context>
chip_gen: v7x
topology: tpu7x:2x2x1
jax: 0.10.0
libtpu: 0.0.40
codegen_flags: <defaults>
</compile_context>

<pallas_src>
import functools

import jax
import jax.numpy as jnp
from jax.experimental import pallas as pl
from jax.experimental.pallas import tpu as pltpu


def _round_up(n, m):
    return ((n + m - 1) // m) * m


def _crop_permute_kernel(x_ref, sel_ref, o_ref, *, crop_x, img_size,
                         num_channels, t_tile):
    """One grid step = t_tile frames of one batch element.

    x_ref  : (t_tile, H, W*C)   channels-last frames (W and C merged on lanes)
    sel_ref: (C, W*C, S)        0/1 selection matrices (resident, DMA'd once)
    o_ref  : (C, t_tile, S, S)  cropped, channels-first frames
    """
    S = img_size
    C = num_channels
    Wc = x_ref.shape[-1]

    # H crop (static sublane slice) + flatten the frames into the matmul M dim.
    # TODO(synk): the H crop could be pushed into the input DMA (element-offset
    # BlockSpec) to shave the (H-S)/H extra read traffic; kept in-kernel for
    # lowering robustness.
    xt = x_ref[:, crop_x:crop_x + S, :]                       # (t_tile, S, Wc)
    xt = xt.reshape(t_tile * S, Wc).astype(sel_ref.dtype)     # free when S % 8 == 0

    # One MXU matmul per channel: simultaneously crops W and de-interleaves
    # channel c.  Exact copy (each output = one input * 1.0 + exact zeros).
    for c in range(C):
        y = jnp.dot(xt, sel_ref[c], preferred_element_type=jnp.float32)
        o_ref[c] = y.reshape(t_tile, S, S).astype(o_ref.dtype)


def augmentation_pipeline(x, img_size, flip=False):
    """x: (B, T, H, W, C) -> (B, C, T, img_size, img_size), center-cropped."""
    del flip  # forward() never applies horizontal_flip
    B, T, H, W, C = x.shape
    S = img_size
    crop_x = (H - S) // 2
    crop_y = (W - S) // 2
    Wc = W * C

    # Free, contiguous reshape: lane axis becomes W*C instead of C.
    x2 = x.reshape(B, T, H, Wc)

    itemsize = jnp.dtype(x.dtype).itemsize
    if jnp.issubdtype(x.dtype, jnp.floating):
        compute_dtype = x.dtype          # bf16 stays bf16 (native MXU path)
    else:
        compute_dtype = jnp.float32      # exact for pixel-range integers
    csize = jnp.dtype(compute_dtype).itemsize

    # Per-channel 0/1 selection matrices, built once in the wrapper:
    #   sel[c, k, j] = 1  iff  k == (crop_y + j) * C + c
    k_idx = jnp.arange(Wc, dtype=jnp.int32)[None, :, None]
    j_idx = jnp.arange(S, dtype=jnp.int32)[None, None, :]
    c_idx = jnp.arange(C, dtype=jnp.int32)[:, None, None]
    sel = (k_idx == (crop_y + j_idx) * C + c_idx).astype(compute_dtype)

    # ---- per-generation VMEM budget / tile sizing --------------------------
    try:
        vmem_cap = int(pltpu.get_tpu_info().vmem_capacity_bytes)
    except Exception:
        vmem_cap = 64 * 1024 * 1024      # conservative fallback (v7x per-TC)
    vmem_limit = min(int(vmem_cap * 0.75), 100 * 1024 * 1024)
    budget = int(vmem_limit * 0.85)

    def _block_bytes(tt):
        # double-buffered pipelined blocks
        in_b = 2 * tt * _round_up(H, 8) * _round_up(Wc, 128) * itemsize
        out_b = 2 * C * tt * _round_up(S, 8) * _round_up(S, 128) * itemsize
        sel_b = 2 * C * _round_up(Wc, 8) * _round_up(S, 128) * csize
        # in-kernel temporaries: cropped/cast slab + f32 matmul result + cast
        tmp_b = (_round_up(tt * S, 8) * _round_up(Wc, 128) * csize
                 + 2 * _round_up(tt * S, 8) * _round_up(S, 128) * 4)
        return in_b + out_b + sel_b + tmp_b

    t_tile = 1
    for cand in range(1, T + 1):
        if _block_bytes(cand) <= budget:
            t_tile = cand
    # T need not divide evenly: the tail block is padded by Pallas (OOB rows
    # only produce garbage in dropped output rows -> still exact).
    n_tt = pl.cdiv(T, t_tile)

    # Megacore (v7x): put the larger axis first so the sharded parallel axis
    # has >= 2 steps whenever possible.  No effect on single-TC v5e/v6e.
    if n_tt >= B:
        grid = (n_tt, B)
        bt = lambda i, j: (j, i)         # -> (b, tt)
    else:
        grid = (B, n_tt)
        bt = lambda i, j: (i, j)

    def in_idx(i, j):
        b, tt = bt(i, j)
        return (b, tt, 0, 0)

    def sel_idx(i, j):
        return (0, 0, 0)                 # constant -> fetched once, resident

    def out_idx(i, j):
        b, tt = bt(i, j)
        return (b, 0, tt, 0, 0)

    kernel = functools.partial(
        _crop_permute_kernel,
        crop_x=crop_x, img_size=S, num_channels=C, t_tile=t_tile,
    )

    cost = pl.CostEstimate(
        flops=2 * B * T * C * S * S * Wc,                 # selection matmuls
        transcendentals=0,
        bytes_accessed=(B * T * H * Wc * itemsize
                        + B * C * T * S * S * itemsize
                        + C * Wc * S * csize),
    )

    return pl.pallas_call(
        kernel,
        out_shape=jax.ShapeDtypeStruct((B, C, T, S, S), x.dtype),
        grid=grid,
        in_specs=[
            # One contiguous slab of t_tile frames per step.
            pl.BlockSpec((None, t_tile, H, Wc), in_idx),
            # Resident selection matrices.
            pl.BlockSpec((C, Wc, S), sel_idx),
        ],
        out_specs=pl.BlockSpec((None, C, t_tile, S, S), out_idx),
        compiler_params=pltpu.CompilerParams(
            dimension_semantics=("parallel", "parallel"),
            vmem_limit_bytes=vmem_limit,
        ),
        cost_estimate=cost,
    )(x2, sel)


if __name__ == "__main__":
    # Small shapes consistent with the module: video clips (B, T, H, W, C).
    B, T, H, W, C = 2, 8, 16, 16, 3
    IMG_SIZE = 8  # args.img_size

    key = jax.random.PRNGKey(0)
    # Integer-valued pixel-like data (what the dataloader feeds this module).
    x = jax.random.randint(key, (B, T, H, W, C), 0, 256).astype(jnp.float32)

    out = jax.block_until_ready(augmentation_pipeline(x, IMG_SIZE))

    # Pure-JAX reference of the torch forward.
    cx = (H - IMG_SIZE) // 2
    cy = (W - IMG_SIZE) // 2
    ref = jnp.transpose(x, (0, 4, 1, 2, 3))[:, :, :, cx:cx + IMG_SIZE, cy:cy + IMG_SIZE]

    assert out.shape == (B, C, T, IMG_SIZE, IMG_SIZE), out.shape
    assert jnp.allclose(out, ref, atol=1e-6, rtol=1e-6), "mismatch vs reference"

    print("KERNEL_OK")
</pallas_src>

<mosaic_0001>
module attributes {stable_mosaic.version = 11 : i64} {
  func.func @_crop_permute_kernel(%arg0: i32, %arg1: i32, %arg2: memref<1x8x16x48xf32, #tpu.memory_space<vmem>>, %arg3: memref<3x48x8xf32, #tpu.memory_space<vmem>>, %arg4: memref<1x3x8x8x8xf32, #tpu.memory_space<vmem>>) attributes {dimension_semantics = [#tpu.dimension_semantics<parallel>, #tpu.dimension_semantics<parallel>], iteration_bounds = array<i64: 2, 1>, scalar_prefetch = 0 : i64, scratch_operands = 0 : i64, tpu.core_type = #tpu.core_type<tc>, window_params = [{transform_indices = @transform_0, window_bounds = array<i64: 1, 8, 16, 48>}, {pipeline_mode = #tpu.pipeline_mode<synchronous>, transform_indices = @transform_1, window_bounds = array<i64: 3, 48, 8>}, {transform_indices = @transform_2, window_bounds = array<i64: 1, 3, 8, 8, 8>}]} {
    %c0 = arith.constant 0 : index
    %c0_0 = arith.constant 0 : index
    %c4 = arith.constant 4 : index
    %c0_1 = arith.constant 0 : index
    %0 = vector.load %arg2[%c0, %c0_0, %c4, %c0_1] : memref<1x8x16x48xf32, #tpu.memory_space<vmem>>, vector<1x8x8x48xf32>
    %1 = vector.shape_cast %0 : vector<1x8x8x48xf32> to vector<8x8x48xf32>
    %2 = vector.shape_cast %1 : vector<8x8x48xf32> to vector<64x48xf32>
    %c0_2 = arith.constant 0 : index
    %c0_3 = arith.constant 0 : index
    %c0_4 = arith.constant 0 : index
    %3 = vector.load %arg3[%c0_2, %c0_3, %c0_4] : memref<3x48x8xf32, #tpu.memory_space<vmem>>, vector<1x48x8xf32>
    %4 = vector.shape_cast %3 : vector<1x48x8xf32> to vector<48x8xf32>
    %cst = arith.constant dense<0.000000e+00> : vector<64x8xf32>
    %5 = tpu.matmul %2, %4, %cst {dimension_numbers = #tpu.dot_dimension_numbers<[1], [0], [0], [1], [0, 0, 1, 1], [], []>} : vector<64x48xf32>, vector<48x8xf32>, vector<64x8xf32> -> vector<64x8xf32>
    %6 = vector.shape_cast %5 : vector<64x8xf32> to vector<8x8x8xf32>
    %c0_5 = arith.constant 0 : index
    %c0_6 = arith.constant 0 : index
    %c0_7 = arith.constant 0 : index
    %c0_8 = arith.constant 0 : index
    %c0_9 = arith.constant 0 : index
    %7 = vector.load %arg4[%c0_5, %c0_6, %c0_7, %c0_8, %c0_9] : memref<1x3x8x8x8xf32, #tpu.memory_space<vmem>>, vector<1x1x8x8x8xf32>
    %8 = vector.shape_cast %7 : vector<1x1x8x8x8xf32> to vector<8x8x8xf32>
    %9 = vector.shape_cast %6 : vector<8x8x8xf32> to vector<1x1x8x8x8xf32>
    tpu.vector_store %arg4[%c0_5, %c0_6, %c0_7, %c0_8, %c0_9], %9 {strides = array<i32>} : memref<1x3x8x8x8xf32, #tpu.memory_space<vmem>>, vector<1x1x8x8x8xf32>,
    %c1 = arith.constant 1 : index
    %c0_10 = arith.constant 0 : index
    %c0_11 = arith.constant 0 : index
    %10 = vector.load %arg3[%c1, %c0_10, %c0_11] : memref<3x48x8xf32, #tpu.memory_space<vmem>>, vector<1x48x8xf32>
    %11 = vector.shape_cast %10 : vector<1x48x8xf32> to vector<48x8xf32>
    %cst_12 = arith.constant dense<0.000000e+00> : vector<64x8xf32>
    %12 = tpu.matmul %2, %11, %cst_12 {dimension_numbers = #tpu.dot_dimension_numbers<[1], [0], [0], [1], [0, 0, 1, 1], [], []>} : vector<64x48xf32>, vector<48x8xf32>, vector<64x8xf32> -> vector<64x8xf32>
    %13 = vector.shape_cast %12 : vector<64x8xf32> to vector<8x8x8xf32>
    %c0_13 = arith.constant 0 : index
    %c1_14 = arith.constant 1 : index
    %c0_15 = arith.constant 0 : index
    %c0_16 = arith.constant 0 : index
    %c0_17 = arith.constant 0 : index
    %14 = vector.load %arg4[%c0_13, %c1_14, %c0_15, %c0_16, %c0_17] : memref<1x3x8x8x8xf32, #tpu.memory_space<vmem>>, vector<1x1x8x8x8xf32>
    %15 = vector.shape_cast %14 : vector<1x1x8x8x8xf32> to vector<8x8x8xf32>
    %16 = vector.shape_cast %13 : vector<8x8x8xf32> to vector<1x1x8x8x8xf32>
    tpu.vector_store %arg4[%c0_13, %c1_14, %c0_15, %c0_16, %c0_17], %16 {strides = array<i32>} : memref<1x3x8x8x8xf32, #tpu.memory_space<vmem>>, vector<1x1x8x8x8xf32>,
    %c2 = arith.constant 2 : index
    %c0_18 = arith.constant 0 : index
    %c0_19 = arith.constant 0 : index
    %17 = vector.load %arg3[%c2, %c0_18, %c0_19] : memref<3x48x8xf32, #tpu.memory_space<vmem>>, vector<1x48x8xf32>
    %18 = vector.shape_cast %17 : vector<1x48x8xf32> to vector<48x8xf32>
    %cst_20 = arith.constant dense<0.000000e+00> : vector<64x8xf32>
    %19 = tpu.matmul %2, %18, %cst_20 {dimension_numbers = #tpu.dot_dimension_numbers<[1], [0], [0], [1], [0, 0, 1, 1], [], []>} : vector<64x48xf32>, vector<48x8xf32>, vector<64x8xf32> -> vector<64x8xf32>
    %20 = vector.shape_cast %19 : vector<64x8xf32> to vector<8x8x8xf32>
    %c0_21 = arith.constant 0 : index
    %c2_22 = arith.constant 2 : index
    %c0_23 = arith.constant 0 : index
    %c0_24 = arith.constant 0 : index
    %c0_25 = arith.constant 0 : index
    %21 = vector.load %arg4[%c0_21, %c2_22, %c0_23, %c0_24, %c0_25] : memref<1x3x8x8x8xf32, #tpu.memory_space<vmem>>, vector<1x1x8x8x8xf32>
    %22 = vector.shape_cast %21 : vector<1x1x8x8x8xf32> to vector<8x8x8xf32>
    %23 = vector.shape_cast %20 : vector<8x8x8xf32> to vector<1x1x8x8x8xf32>
    tpu.vector_store %arg4[%c0_21, %c2_22, %c0_23, %c0_24, %c0_25], %23 {strides = array<i32>} : memref<1x3x8x8x8xf32, #tpu.memory_space<vmem>>, vector<1x1x8x8x8xf32>,
    return
  }
  func.func @transform_0(%arg0: i32, %arg1: i32) -> (i32, i32, i32, i32) {
    %c0_i32 = arith.constant 0 : i32
    %c0_i32_0 = arith.constant 0 : i32
    %c0_i32_1 = arith.constant 0 : i32
    return %arg0, %arg1, %c0_i32, %c0_i32_0 : i32, i32, i32, i32
  }
  func.func @transform_1(%arg0: i32, %arg1: i32) -> (i32, i32, i32) {
    %c0_i32 = arith.constant 0 : i32
    %c0_i32_0 = arith.constant 0 : i32
    %c0_i32_1 = arith.constant 0 : i32
    %c0_i32_2 = arith.constant 0 : i32
    return %c0_i32, %c0_i32_0, %c0_i32_1 : i32, i32, i32
  }
  func.func @transform_2(%arg0: i32, %arg1: i32) -> (i32, i32, i32, i32, i32) {
    %c0_i32 = arith.constant 0 : i32
    %c0_i32_0 = arith.constant 0 : i32
    %c0_i32_1 = arith.constant 0 : i32
    %c0_i32_2 = arith.constant 0 : i32
    return %arg0, %c0_i32, %arg1, %c0_i32_0, %c0_i32_1 : i32, i32, i32, i32, i32
  }
}

</mosaic_0001>

<llo_original>
// kernel: tpu_custom_call.1
$region0: #{tpu_custom_call.1}
  #allocation0 [shape = 'u32[]', space=smem, size = 0x4, offset = 0x4, fixed_abs, tag = 'smem constant byte address 0x4 - core index']
  #allocation1 [shape = 'u32[144,128]{1,0:T(1,128)}', space=vmem, size = 0x12000, scoped, tag = 'internal scratch']
  %s0 = inlined_call_operand.hbm [shape: f32[2,8,16,48], index: 0, kind: input, shape index: {}]
  %s1 = inlined_call_operand.vmem [shape: f32[3,48,8], index: 1, kind: input, shape index: {}]
  %s2 = inlined_call_operand.hbm [shape: f32[2,3,8,8,8], index: 2, kind: output, shape index: {}]
  %s3 = sld [smem:[#allocation0]]
  $region45: #{tpu_custom_call.1} parent=0
    _
  %s5 = ssub.s32 1, %s3
  %s6 = scalar_select 0, %s5, %s3
  $region1: #{tpu_custom_call.1} parent=0
    #allocation2 [shape = 'u8[131072]{0}', space=vmem, size = 0x20000, scoped, tag = 'input window, operand 0']
    #allocation3 [shape = 's32[2]{0}', space=sflag, size = 0x8, scoped, tag = 'scoped memory for tpu_custom_call.1']
    #allocation4 [shape = 's32[2]{0}', space=sflag, size = 0x8, scoped, tag = 'scoped memory for tpu_custom_call.1']
    #allocation5 [shape = 'u8[196608]{0}', space=vmem, size = 0x30000, scoped, tag = 'output window, operand 0']
    %7 = vsyncpa [#allocation3], 0
    %s8 = scalar_lea.sflag [#allocation3], 1
    %9 = vsyncpa %s8, 0
    %10 = vsyncpa [#allocation4], 0
    %s11 = scalar_lea.sflag [#allocation4], 1
    %12 = vsyncpa %s11, 0
    loop: start=0, step=1, limit=4
    $region2: #{tpu_custom_call.1} parent=1 // loop_pre_header
      _
    $region3: #{tpu_custom_call.1} parent=1 // loop_header
      %s14 = sphi 0, %s18
      %p15 = scmp.ge.s32.totalorder %s14, 4
      %s21 = sphi 0, %s33
      %s22 = sphi 0, %s29
      %s23 = sphi 0, %s21
      %s24 = sphi 0, %s22
      %s25 = sphi 0, %s23
      %s26 = sphi 0, %s24
      %s38 = sphi 0, %s40
      %s41 = sphi 0, %s38
      %s42 = sphi 0, %s41
      %s58 = sphi 0, %s42
      %s62 = sphi 0, %s62
      %s64 = sphi 0, %s62
      %s65 = sphi 0, %s64
      %s79 = sphi 0, %s65
      %s87 = sphi 0, %s89
      %s90 = sphi 0, %s87
      %s91 = sphi 0, %s90
      %s107 = sphi 0, %s91
    $region4: #{tpu_custom_call.1} parent=1 // loop_header_branch
      %17 = sbr.rel (%p15) target = $region8
    $region5: #{tpu_custom_call.1} parent=1 // loop_body
      %s19 = ssub.s32 %s14, 1
      %s20 = ssub.s32 %s14, 2
      %s27 = sadd.s32 1, %s22
      %p28 = scmp.ge.s32.totalorder %s27, 1
      %s29 = scalar_select %p28, 0, %s27
      %s30 = sadd.s32 1, %s21
      %s31 = scalar_select %p28, %s30, %s21
      %p32 = scmp.ge.s32.totalorder %s31, 2
      %s33 = scalar_select %p32, 0, %s31
      %s34 = ssub.s32 %s21, %s33
      %s35 = ssub.s32 %s22, %s29
      %s36 = sor.u32 %s34, %s35
      %p37 = scmp.eq.s32.totalorder %s36, 0
      %s39 = sadd.s32 %s38, 1
      %s40 = scalar_select %p37, %s38, %s39
      %p43 = pneg %p37
      %p44 = scmp.eq.s32.totalorder %s14, 1
      %p45 = por %p43, %p44
      %p46 = scmp.ne.s32.totalorder %s38, %s41
      %p47 = scmp.eq.s32.totalorder %s14, 0
      %p48 = por %p46, %p47
      %p49 = scmp.ne.s32.totalorder %s38, %s41
      %p50 = scmp.eq.s32.totalorder %s19, 1
      %p51 = por %p49, %p50
      %p52 = scmp.ne.s32.totalorder %s41, %s42
      %p53 = scmp.eq.s32.totalorder %s19, 0
      %p54 = por %p52, %p53
      %p55 = scmp.ne.s32.totalorder %s41, %s42
      %p56 = scmp.eq.s32.totalorder %s20, 1
      %p57 = por %p55, %p56
      %p59 = scmp.ne.s32.totalorder %s42, %s58
      %p60 = scmp.eq.s32.totalorder %s20, 0
      %p61 = por %p59, %p60
      %s63 = sadd.s32 %s62, 1
      %p66 = scmp.eq.s32.totalorder %s14, 1
      %p67 = scmp.ne.s32.totalorder %s62, %s64
      %p68 = scmp.eq.s32.totalorder %s14, 0
      %p69 = por %p67, %p68
      %p70 = scmp.ne.s32.totalorder %s62, %s64
      %p71 = scmp.eq.s32.totalorder %s19, 1
      %p72 = por %p70, %p71
      %p73 = scmp.ne.s32.totalorder %s64, %s65
      %p74 = scmp.eq.s32.totalorder %s19, 0
      %p75 = por %p73, %p74
      %p76 = scmp.ne.s32.totalorder %s64, %s65
      %p77 = scmp.eq.s32.totalorder %s20, 1
      %p78 = por %p76, %p77
      %p80 = scmp.ne.s32.totalorder %s65, %s79
      %p81 = scmp.eq.s32.totalorder %s20, 0
      %p82 = por %p80, %p81
      %s83 = ssub.s32 %s21, %s33
      %s84 = ssub.s32 %s22, %s29
      %s85 = sor.u32 %s83, %s84
      %p86 = scmp.eq.s32.totalorder %s85, 0
      %s88 = sadd.s32 %s87, 1
      %s89 = scalar_select %p86, %s87, %s88
      %p92 = pneg %p86
      %p93 = scmp.eq.s32.totalorder %s14, 1
      %p94 = por %p92, %p93
      %p95 = scmp.ne.s32.totalorder %s87, %s90
      %p96 = scmp.eq.s32.totalorder %s14, 0
      %p97 = por %p95, %p96
      %p98 = scmp.ne.s32.totalorder %s87, %s90
      %p99 = scmp.eq.s32.totalorder %s19, 1
      %p100 = por %p98, %p99
      %p101 = scmp.ne.s32.totalorder %s90, %s91
      %p102 = scmp.eq.s32.totalorder %s19, 0
      %p103 = por %p101, %p102
      %p104 = scmp.ne.s32.totalorder %s90, %s91
      %p105 = scmp.eq.s32.totalorder %s20, 1
      %p106 = por %p104, %p105
      %p108 = scmp.ne.s32.totalorder %s91, %s107
      %p109 = scmp.eq.s32.totalorder %s20, 0
      %p110 = por %p108, %p109
      %p111 = scmp.le.s32.totalorder 1, %s14
      %p112 = scmp.lt.s32.totalorder %s14, 3
      %p113 = pnand %p111, %p112
      %p114 = pneg %p113
      // Predicated region
      $region9: #{tpu_custom_call.1} parent=5 // pred_check
        _
      $region10: #{tpu_custom_call.1} parent=5 // pred_check_branch
        %116 = sbr.rel (%p113) target = $region12
      $region11: #{tpu_custom_call.1} parent=5 // pred_region
        %s117 = ssub.s32 %s14, 1
        // Predicated region
        $region13: #{tpu_custom_call.1} parent=11 // pred_check
          %p118 = pneg %p75
        $region14: #{tpu_custom_call.1} parent=11 // pred_check_branch
          %120 = sbr.rel (%p118) target = $region16
        $region15: #{tpu_custom_call.1} parent=11 // pred_region
          _
        $region16: #{tpu_custom_call.1} parent=11 // pred_fallthru
          _
      $region12: #{tpu_custom_call.1} parent=5 // pred_fallthru
        _
      %p121 = scmp.lt.s32.totalorder %s14, 2
      // Predicated region
      $region17: #{tpu_custom_call.1} parent=5 // pred_check
        %p122 = pneg %p121
      $region18: #{tpu_custom_call.1} parent=5 // pred_check_branch
        %124 = sbr.rel (%p122) target = $region20
      $region19: #{tpu_custom_call.1} parent=5 // pred_region
        // Predicated region
        $region21: #{tpu_custom_call.1} parent=19 // pred_check
          %p125 = pneg %p48
        $region22: #{tpu_custom_call.1} parent=19 // pred_check_branch
          %127 = sbr.rel (%p125) target = $region24
        $region23: #{tpu_custom_call.1} parent=19 // pred_region
          %s128 = sand.u32 %s38, 1
          %s129 = scalar_lea.sflag [#allocation3], %s128
          %s130 = sand.u32 %s38, 1
          %s131 = smul.addr %s130, 128
          %s132 = scalar_lea.vmem [#allocation2], %s131
          %s133 = smul.u32 8, %s22
          %s135 = ssub.s32 2048, 2048
          %136 = vsyncadd %s129, %s135
          %s137 = smul.addr %s133, 2
          %s138 = smul.addr %s21, 16
          %s139 = sadd.s32 %s137, %s138
          %s140 = smul.addr %s139, 128
          %s141 = scalar_lea.hbm %s0, %s140
          %s142 = sshll.u32 %s132, 4
          %s143 = int_to_ptr.vmem [resolvable:$true] %s142
          %148 = dma.hbm_to_vmem [thread:$0]  %s141, 2048, %s143, %s129, 128, 128, 8
        $region24: #{tpu_custom_call.1} parent=19 // pred_fallthru
          _
      $region20: #{tpu_custom_call.1} parent=5 // pred_fallthru
        _
      %p149 = scmp.le.s32.totalorder 1, %s14
      %p150 = scmp.lt.s32.totalorder %s14, 3
      %p151 = pnand %p149, %p150
      %p152 = pneg %p151
      // Predicated region
      $region25: #{tpu_custom_call.1} parent=5 // pred_check
        _
      $region26: #{tpu_custom_call.1} parent=5 // pred_check_branch
        %154 = sbr.rel (%p151) target = $region28
      $region27: #{tpu_custom_call.1} parent=5 // pred_region
        %s155 = ssub.s32 %s14, 1
        %s156 = sand.u32 %s41, 1
        %s157 = scalar_lea.sflag [#allocation3], %s156
        %s158 = sand.u32 %s41, 1
        %s159 = smul.addr %s158, 128
        %s160 = scalar_lea.vmem [#allocation2], %s159
        // Predicated region
        $region29: #{tpu_custom_call.1} parent=27 // pred_check
          %p161 = pneg %p54
        $region30: #{tpu_custom_call.1} parent=27 // pred_check_branch
          %163 = sbr.rel (%p161) target = $region32
        $region31: #{tpu_custom_call.1} parent=27 // pred_region
          %164 = dma.done %s157, 2048
        $region32: #{tpu_custom_call.1} parent=27 // pred_fallthru
          _
        %s165 = sand.u32 %s41, 1
        %s166 = scalar_lea.sflag [#allocation3], %s165
        %s167 = sand.u32 %s41, 1
        %s168 = smul.addr %s167, 128
        %s169 = scalar_lea.vmem [#allocation2], %s168
        %p170 = pneg %p54
        %p171 = pneg %p51
        %p172 = pneg %p75
        %p173 = pneg %p72
        %p174 = pneg %p103
        %p175 = pneg %p100
        %s176 = sand.u32 %s90, 1
        %s177 = scalar_lea.sflag [#allocation4], %s176
        %s178 = sand.u32 %s90, 1
        %s179 = smul.addr %s178, 192
        %s180 = scalar_lea.vmem [#allocation5], %s179
        %s181 = smul.u32 8, %s24
        %s182 = smul.u32 8, %s24
        %v183 = vld [vmem:[%s160 + $0x4] sm:$0xff]
        %v184 = vld [vmem:[%s160 + $0x14] sm:$0xff]
        %v185 = vld [vmem:[%s160 + $0x24] sm:$0xff]
        %v186 = vld [vmem:[%s160 + $0x34] sm:$0xff]
        %v187 = vld [vmem:[%s160 + $0x44] sm:$0xff]
        %v188 = vld [vmem:[%s160 + $0x54] sm:$0xff]
        %v189 = vld [vmem:[%s160 + $0x64] sm:$0xff]
        %v190 = vld [vmem:[%s160 + $0x74] sm:$0xff]
        %v191 = vld [vmem:[%s1] sm:$0xff]
        %v192 = vld [vmem:[%s1 + $0x8] sm:$0xff]
        %v193 = vld [vmem:[%s1 + $0x10] sm:$0xff]
        %v194 = vld [vmem:[%s1 + $0x18] sm:$0xff]
        %v195 = vld [vmem:[%s1 + $0x20] sm:$0xff]
        %v196 = vld [vmem:[%s1 + $0x28] sm:$0xff]
        %vm197 = vcmask 392192
        %v199 = vsel %vm197, %v183, 0
        %v202 = vsel %vm197, %v184, 0
        %v205 = vsel %vm197, %v185, 0
        %v208 = vsel %vm197, %v186, 0
        %v211 = vsel %vm197, %v187, 0
        %v214 = vsel %vm197, %v188, 0
        %v217 = vsel %vm197, %v189, 0
        %v220 = vsel %vm197, %v190, 0
        %222 = vmatprep.subr.mxu0 0.0
        %223 = vmatpush1.msra.mxu0 %v191
        %224 = vmatprep.subr.mxu0 0.0
        %225 = vmatpush1.msra.mxu0 %v192
        %226 = vmatprep.subr.mxu0 0.0
        %227 = vmatpush1.msra.mxu0 %v193
        %228 = vmatprep.subr.mxu0 0.0
        %229 = vmatpush1.msra.mxu0 %v194
        %230 = vmatprep.subr.mxu0 0.0
        %231 = vmatpush1.msra.mxu0 %v195
        %232 = vmatprep.subr.mxu0 0.0
        %233 = vmatpush1.msra.mxu0 %v196
        %234 = vmatprep.subr.mxu0 0.0
        %235 = vmatpush1.msra.mxu0 0.0
        %236 = vmatprep.subr.mxu0 0.0
        %237 = vmatpush1.msra.mxu0 0.0
        %238 = vmatprep.subr.mxu0 0.0
        %239 = vmatpush1.msra.mxu0 0.0
        %240 = vmatprep.subr.mxu0 0.0
        %241 = vmatpush1.msra.mxu0 0.0
        %242 = vmatprep.subr.mxu0 0.0
        %243 = vmatpush1.msra.mxu0 0.0
        %244 = vmatprep.subr.mxu0 0.0
        %245 = vmatpush1.msra.mxu0 0.0
        %246 = vmatprep.subr.mxu0 0.0
        %247 = vmatpush1.msra.mxu0 0.0
        %248 = vmatprep.subr.mxu0 0.0
        %249 = vmatpush1.msra.mxu0 0.0
        %250 = vmatprep.subr.mxu0 0.0
        %251 = vmatpush1.msra.mxu0 0.0
        %252 = vmatprep.subr.mxu0 0.0
        %253 = vmatpush1.msra.mxu0 0.0
        %254 = vmatprep.subr.mxu0 0.0
        %255 = vmatpush1.msra.mxu0 0.0
        %256 = vmatprep.subr.mxu0 0.0
        %257 = vmatpush1.msra.mxu0 0.0
        %258 = vmatprep.subr.mxu0 0.0
        %259 = vmatpush1.msra.mxu0 0.0
        %260 = vmatprep.subr.mxu0 0.0
        %261 = vmatpush1.msra.mxu0 0.0
        %262 = vmatprep.subr.mxu0 0.0
        %263 = vmatpush1.msra.mxu0 0.0
        %264 = vmatprep.subr.mxu0 0.0
        %265 = vmatpush1.msra.mxu0 0.0
        %266 = vmatprep.subr.mxu0 0.0
        %267 = vmatpush1.msra.mxu0 0.0
        %268 = vmatprep.subr.mxu0 0.0
        %269 = vmatpush1.msra.mxu0 0.0
        %270 = vmatprep.subr.mxu0 0.0
        %271 = vmatpush1.msra.mxu0 0.0
        %272 = vmatprep.subr.mxu0 0.0
        %273 = vmatpush1.msra.mxu0 0.0
        %274 = vmatprep.subr.mxu0 0.0
        %275 = vmatpush1.msra.mxu0 0.0
        %276 = vmatprep.subr.mxu0 0.0
        %277 = vmatpush1.msra.mxu0 0.0
        %278 = vmatprep.subr.mxu0 0.0
        %279 = vmatpush1.msra.mxu0 0.0
        %280 = vmatprep.subr.mxu0 0.0
        %281 = vmatpush1.msra.mxu0 0.0
        %282 = vmatprep.subr.mxu0 0.0
        %283 = vmatpush1.msra.mxu0 0.0
        %284 = vmatprep.subr.mxu0 0.0
        %285 = vmatpush1.msra.mxu0 0.0
        %286 = vmatprep.mubr.f32.mxu0 0.0
        %287 = vmatmul.mubr.f32.gmra.mrb[0].mxu0 %v199
        %v288 = vpop.f32.mrb[0].mxu0
        %v289 = vadd.f32 0.0, %v288
        %v290 = vpop.f32.mrb[0].mxu0
        %291 = vmatprep.mubr.f32.mxu0 0.0
        %292 = vmatmul.mubr.f32.gmra.mrb[0].mxu0 %v202
        %v293 = vpop.f32.mrb[0].mxu0
        %v294 = vadd.f32 0.0, %v293
        %v295 = vpop.f32.mrb[0].mxu0
        %296 = vmatprep.mubr.f32.mxu0 0.0
        %297 = vmatmul.mubr.f32.gmra.mrb[0].mxu0 %v205
        %v298 = vpop.f32.mrb[0].mxu0
        %v299 = vadd.f32 0.0, %v298
        %v300 = vpop.f32.mrb[0].mxu0
        %301 = vmatprep.mubr.f32.mxu0 0.0
        %302 = vmatmul.mubr.f32.gmra.mrb[0].mxu0 %v208
        %v303 = vpop.f32.mrb[0].mxu0
        %v304 = vadd.f32 0.0, %v303
        %v305 = vpop.f32.mrb[0].mxu0
        %306 = vmatprep.mubr.f32.mxu0 0.0
        %307 = vmatmul.mubr.f32.gmra.mrb[0].mxu0 %v211
        %v308 = vpop.f32.mrb[0].mxu0
        %v309 = vadd.f32 0.0, %v308
        %v310 = vpop.f32.mrb[0].mxu0
        %311 = vmatprep.mubr.f32.mxu0 0.0
        %312 = vmatmul.mubr.f32.gmra.mrb[0].mxu0 %v214
        %v313 = vpop.f32.mrb[0].mxu0
        %v314 = vadd.f32 0.0, %v313
        %v315 = vpop.f32.mrb[0].mxu0
        %316 = vmatprep.mubr.f32.mxu0 0.0
        %317 = vmatmul.mubr.f32.gmra.mrb[0].mxu0 %v217
        %v318 = vpop.f32.mrb[0].mxu0
        %v319 = vadd.f32 0.0, %v318
        %v320 = vpop.f32.mrb[0].mxu0
        %321 = vmatprep.mubr.f32.mxu0 0.0
        %322 = vmatmul.mubr.f32.gmra.mrb[0].mxu0 %v220
        %v323 = vpop.f32.mrb[0].mxu0
        %v324 = vadd.f32 0.0, %v323
        %v325 = vpop.f32.mrb[0].mxu0
        %326 = vdwg.mxu0
        %vm327 = vcmask 64512
        %328 = vst.msk [vmem:[%s180] sm:$0xff] %vm327, %v289
        %329 = vst.msk [vmem:[%s180 + $0x8] sm:$0xff] %vm327, %v294
        %330 = vst.msk [vmem:[%s180 + $0x10] sm:$0xff] %vm327, %v299
        %331 = vst.msk [vmem:[%s180 + $0x18] sm:$0xff] %vm327, %v304
        %332 = vst.msk [vmem:[%s180 + $0x20] sm:$0xff] %vm327, %v309
        %333 = vst.msk [vmem:[%s180 + $0x28] sm:$0xff] %vm327, %v314
        %334 = vst.msk [vmem:[%s180 + $0x30] sm:$0xff] %vm327, %v319
        %335 = vst.msk [vmem:[%s180 + $0x38] sm:$0xff] %vm327, %v324
        %s336 = scalar_lea.vmem %s1, 48
        %v337 = vld [vmem:[%s336] sm:$0xff]
        %v338 = vld [vmem:[%s336 + $0x8] sm:$0xff]
        %v339 = vld [vmem:[%s336 + $0x10] sm:$0xff]
        %v340 = vld [vmem:[%s336 + $0x18] sm:$0xff]
        %v341 = vld [vmem:[%s336 + $0x20] sm:$0xff]
        %v342 = vld [vmem:[%s336 + $0x28] sm:$0xff]
        %343 = vmatprep.subr.mxu0 0.0
        %344 = vmatpush1.msra.mxu0 %v337
        %345 = vmatprep.subr.mxu0 0.0
        %346 = vmatpush1.msra.mxu0 %v338
        %347 = vmatprep.subr.mxu0 0.0
        %348 = vmatpush1.msra.mxu0 %v339
        %349 = vmatprep.subr.mxu0 0.0
        %350 = vmatpush1.msra.mxu0 %v340
        %351 = vmatprep.subr.mxu0 0.0
        %352 = vmatpush1.msra.mxu0 %v341
        %353 = vmatprep.subr.mxu0 0.0
        %354 = vmatpush1.msra.mxu0 %v342
        %355 = vmatprep.subr.mxu0 0.0
        %356 = vmatpush1.msra.mxu0 0.0
        %357 = vmatprep.subr.mxu0 0.0
        %358 = vmatpush1.msra.mxu0 0.0
        %359 = vmatprep.subr.mxu0 0.0
        %360 = vmatpush1.msra.mxu0 0.0
        %361 = vmatprep.subr.mxu0 0.0
        %362 = vmatpush1.msra.mxu0 0.0
        %363 = vmatprep.subr.mxu0 0.0
        %364 = vmatpush1.msra.mxu0 0.0
        %365 = vmatprep.subr.mxu0 0.0
        %366 = vmatpush1.msra.mxu0 0.0
        %367 = vmatprep.subr.mxu0 0.0
        %368 = vmatpush1.msra.mxu0 0.0
        %369 = vmatprep.subr.mxu0 0.0
        %370 = vmatpush1.msra.mxu0 0.0
        %371 = vmatprep.subr.mxu0 0.0
        %372 = vmatpush1.msra.mxu0 0.0
        %373 = vmatprep.subr.mxu0 0.0
        %374 = vmatpush1.msra.mxu0 0.0
        %375 = vmatprep.subr.mxu0 0.0
        %376 = vmatpush1.msra.mxu0 0.0
        %377 = vmatprep.subr.mxu0 0.0
        %378 = vmatpush1.msra.mxu0 0.0
        %379 = vmatprep.subr.mxu0 0.0
        %380 = vmatpush1.msra.mxu0 0.0
        %381 = vmatprep.subr.mxu0 0.0
        %382 = vmatpush1.msra.mxu0 0.0
        %383 = vmatprep.subr.mxu0 0.0
        %384 = vmatpush1.msra.mxu0 0.0
        %385 = vmatprep.subr.mxu0 0.0
        %386 = vmatpush1.msra.mxu0 0.0
        %387 = vmatprep.subr.mxu0 0.0
        %388 = vmatpush1.msra.mxu0 0.0
        %389 = vmatprep.subr.mxu0 0.0
        %390 = vmatpush1.msra.mxu0 0.0
        %391 = vmatprep.subr.mxu0 0.0
        %392 = vmatpush1.msra.mxu0 0.0
        %393 = vmatprep.subr.mxu0 0.0
        %394 = vmatpush1.msra.mxu0 0.0
        %395 = vmatprep.subr.mxu0 0.0
        %396 = vmatpush1.msra.mxu0 0.0
        %397 = vmatprep.subr.mxu0 0.0
        %398 = vmatpush1.msra.mxu0 0.0
        %399 = vmatprep.subr.mxu0 0.0
        %400 = vmatpush1.msra.mxu0 0.0
        %401 = vmatprep.subr.mxu0 0.0
        %402 = vmatpush1.msra.mxu0 0.0
        %403 = vmatprep.subr.mxu0 0.0
        %404 = vmatpush1.msra.mxu0 0.0
        %405 = vmatprep.subr.mxu0 0.0
        %406 = vmatpush1.msra.mxu0 0.0
        %407 = vmatprep.mubr.f32.mxu0 0.0
        %408 = vmatmul.mubr.f32.gmra.mrb[0].mxu0 %v199
        %v409 = vpop.f32.mrb[0].mxu0
        %v410 = vadd.f32 0.0, %v409
        %v411 = vpop.f32.mrb[0].mxu0
        %412 = vmatprep.mubr.f32.mxu0 0.0
        %413 = vmatmul.mubr.f32.gmra.mrb[0].mxu0 %v202
        %v414 = vpop.f32.mrb[0].mxu0
        %v415 = vadd.f32 0.0, %v414
        %v416 = vpop.f32.mrb[0].mxu0
        %417 = vmatprep.mubr.f32.mxu0 0.0
        %418 = vmatmul.mubr.f32.gmra.mrb[0].mxu0 %v205
        %v419 = vpop.f32.mrb[0].mxu0
        %v420 = vadd.f32 0.0, %v419
        %v421 = vpop.f32.mrb[0].mxu0
        %422 = vmatprep.mubr.f32.mxu0 0.0
        %423 = vmatmul.mubr.f32.gmra.mrb[0].mxu0 %v208
        %v424 = vpop.f32.mrb[0].mxu0
        %v425 = vadd.f32 0.0, %v424
        %v426 = vpop.f32.mrb[0].mxu0
        %427 = vmatprep.mubr.f32.mxu0 0.0
        %428 = vmatmul.mubr.f32.gmra.mrb[0].mxu0 %v211
        %v429 = vpop.f32.mrb[0].mxu0
        %v430 = vadd.f32 0.0, %v429
        %v431 = vpop.f32.mrb[0].mxu0
        %432 = vmatprep.mubr.f32.mxu0 0.0
        %433 = vmatmul.mubr.f32.gmra.mrb[0].mxu0 %v214
        %v434 = vpop.f32.mrb[0].mxu0
        %v435 = vadd.f32 0.0, %v434
        %v436 = vpop.f32.mrb[0].mxu0
        %437 = vmatprep.mubr.f32.mxu0 0.0
        %438 = vmatmul.mubr.f32.gmra.mrb[0].mxu0 %v217
        %v439 = vpop.f32.mrb[0].mxu0
        %v440 = vadd.f32 0.0, %v439
        %v441 = vpop.f32.mrb[0].mxu0
        %442 = vmatprep.mubr.f32.mxu0 0.0
        %443 = vmatmul.mubr.f32.gmra.mrb[0].mxu0 %v220
        %v444 = vpop.f32.mrb[0].mxu0
        %v445 = vadd.f32 0.0, %v444
        %v446 = vpop.f32.mrb[0].mxu0
        %447 = vdwg.mxu0
        %s448 = scalar_lea.vmem %s180, 64 [#allocation5]
        %449 = vst.msk [vmem:[%s448] sm:$0xff] %vm327, %v410
        %450 = vst.msk [vmem:[%s448 + $0x8] sm:$0xff] %vm327, %v415
        %451 = vst.msk [vmem:[%s448 + $0x10] sm:$0xff] %vm327, %v420
        %452 = vst.msk [vmem:[%s448 + $0x18] sm:$0xff] %vm327, %v425
        %453 = vst.msk [vmem:[%s448 + $0x20] sm:$0xff] %vm327, %v430
        %454 = vst.msk [vmem:[%s448 + $0x28] sm:$0xff] %vm327, %v435
        %455 = vst.msk [vmem:[%s448 + $0x30] sm:$0xff] %vm327, %v440
        %456 = vst.msk [vmem:[%s448 + $0x38] sm:$0xff] %vm327, %v445
        %s457 = scalar_lea.vmem %s1, 96
        %v458 = vld [vmem:[%s457] sm:$0xff]
        %v459 = vld [vmem:[%s457 + $0x8] sm:$0xff]
        %v460 = vld [vmem:[%s457 + $0x10] sm:$0xff]
        %v461 = vld [vmem:[%s457 + $0x18] sm:$0xff]
        %v462 = vld [vmem:[%s457 + $0x20] sm:$0xff]
        %v463 = vld [vmem:[%s457 + $0x28] sm:$0xff]
        %464 = vmatprep.subr.mxu0 0.0
        %465 = vmatpush1.msra.mxu0 %v458
        %466 = vmatprep.subr.mxu0 0.0
        %467 = vmatpush1.msra.mxu0 %v459
        %468 = vmatprep.subr.mxu0 0.0
        %469 = vmatpush1.msra.mxu0 %v460
        %470 = vmatprep.subr.mxu0 0.0
        %471 = vmatpush1.msra.mxu0 %v461
        %472 = vmatprep.subr.mxu0 0.0
        %473 = vmatpush1.msra.mxu0 %v462
        %474 = vmatprep.subr.mxu0 0.0
        %475 = vmatpush1.msra.mxu0 %v463
        %476 = vmatprep.subr.mxu0 0.0
        %477 = vmatpush1.msra.mxu0 0.0
        %478 = vmatprep.subr.mxu0 0.0
        %479 = vmatpush1.msra.mxu0 0.0
        %480 = vmatprep.subr.mxu0 0.0
        %481 = vmatpush1.msra.mxu0 0.0
        %482 = vmatprep.subr.mxu0 0.0
        %483 = vmatpush1.msra.mxu0 0.0
        %484 = vmatprep.subr.mxu0 0.0
        %485 = vmatpush1.msra.mxu0 0.0
        %486 = vmatprep.subr.mxu0 0.0
        %487 = vmatpush1.msra.mxu0 0.0
        %488 = vmatprep.subr.mxu0 0.0
        %489 = vmatpush1.msra.mxu0 0.0
        %490 = vmatprep.subr.mxu0 0.0
        %491 = vmatpush1.msra.mxu0 0.0
        %492 = vmatprep.subr.mxu0 0.0
        %493 = vmatpush1.msra.mxu0 0.0
        %494 = vmatprep.subr.mxu0 0.0
        %495 = vmatpush1.msra.mxu0 0.0
        %496 = vmatprep.subr.mxu0 0.0
        %497 = vmatpush1.msra.mxu0 0.0
        %498 = vmatprep.subr.mxu0 0.0
        %499 = vmatpush1.msra.mxu0 0.0
        %500 = vmatprep.subr.mxu0 0.0
        %501 = vmatpush1.msra.mxu0 0.0
        %502 = vmatprep.subr.mxu0 0.0
        %503 = vmatpush1.msra.mxu0 0.0
        %504 = vmatprep.subr.mxu0 0.0
        %505 = vmatpush1.msra.mxu0 0.0
        %506 = vmatprep.subr.mxu0 0.0
        %507 = vmatpush1.msra.mxu0 0.0
        %508 = vmatprep.subr.mxu0 0.0
        %509 = vmatpush1.msra.mxu0 0.0
        %510 = vmatprep.subr.mxu0 0.0
        %511 = vmatpush1.msra.mxu0 0.0
        %512 = vmatprep.subr.mxu0 0.0
        %513 = vmatpush1.msra.mxu0 0.0
        %514 = vmatprep.subr.mxu0 0.0
        %515 = vmatpush1.msra.mxu0 0.0
        %516 = vmatprep.subr.mxu0 0.0
        %517 = vmatpush1.msra.mxu0 0.0
        %518 = vmatprep.subr.mxu0 0.0
        %519 = vmatpush1.msra.mxu0 0.0
        %520 = vmatprep.subr.mxu0 0.0
        %521 = vmatpush1.msra.mxu0 0.0
        %522 = vmatprep.subr.mxu0 0.0
        %523 = vmatpush1.msra.mxu0 0.0
        %524 = vmatprep.subr.mxu0 0.0
        %525 = vmatpush1.msra.mxu0 0.0
        %526 = vmatprep.subr.mxu0 0.0
        %527 = vmatpush1.msra.mxu0 0.0
        %528 = vmatprep.mubr.f32.mxu0 0.0
        %529 = vmatmul.mubr.f32.gmra.mrb[0].mxu0 %v199
        %v530 = vpop.f32.mrb[0].mxu0
        %v531 = vadd.f32 0.0, %v530
        %v532 = vpop.f32.mrb[0].mxu0
        %533 = vmatprep.mubr.f32.mxu0 0.0
        %534 = vmatmul.mubr.f32.gmra.mrb[0].mxu0 %v202
        %v535 = vpop.f32.mrb[0].mxu0
        %v536 = vadd.f32 0.0, %v535
        %v537 = vpop.f32.mrb[0].mxu0
        %538 = vmatprep.mubr.f32.mxu0 0.0
        %539 = vmatmul.mubr.f32.gmra.mrb[0].mxu0 %v205
        %v540 = vpop.f32.mrb[0].mxu0
        %v541 = vadd.f32 0.0, %v540
        %v542 = vpop.f32.mrb[0].mxu0
        %543 = vmatprep.mubr.f32.mxu0 0.0
        %544 = vmatmul.mubr.f32.gmra.mrb[0].mxu0 %v208
        %v545 = vpop.f32.mrb[0].mxu0
        %v546 = vadd.f32 0.0, %v545
        %v547 = vpop.f32.mrb[0].mxu0
        %548 = vmatprep.mubr.f32.mxu0 0.0
        %549 = vmatmul.mubr.f32.gmra.mrb[0].mxu0 %v211
        %v550 = vpop.f32.mrb[0].mxu0
        %v551 = vadd.f32 0.0, %v550
        %v552 = vpop.f32.mrb[0].mxu0
        %553 = vmatprep.mubr.f32.mxu0 0.0
        %554 = vmatmul.mubr.f32.gmra.mrb[0].mxu0 %v214
        %v555 = vpop.f32.mrb[0].mxu0
        %v556 = vadd.f32 0.0, %v555
        %v557 = vpop.f32.mrb[0].mxu0
        %558 = vmatprep.mubr.f32.mxu0 0.0
        %559 = vmatmul.mubr.f32.gmra.mrb[0].mxu0 %v217
        %v560 = vpop.f32.mrb[0].mxu0
        %v561 = vadd.f32 0.0, %v560
        %v562 = vpop.f32.mrb[0].mxu0
        %563 = vmatprep.mubr.f32.mxu0 0.0
        %564 = vmatmul.mubr.f32.gmra.mrb[0].mxu0 %v220
        %v565 = vpop.f32.mrb[0].mxu0
        %v566 = vadd.f32 0.0, %v565
        %v567 = vpop.f32.mrb[0].mxu0
        %568 = vdwg.mxu0
        %s569 = scalar_lea.vmem %s180, 128 [#allocation5]
        %570 = vst.msk [vmem:[%s569] sm:$0xff] %vm327, %v531
        %571 = vst.msk [vmem:[%s569 + $0x8] sm:$0xff] %vm327, %v536
        %572 = vst.msk [vmem:[%s569 + $0x10] sm:$0xff] %vm327, %v541
        %573 = vst.msk [vmem:[%s569 + $0x18] sm:$0xff] %vm327, %v546
        %574 = vst.msk [vmem:[%s569 + $0x20] sm:$0xff] %vm327, %v551
        %575 = vst.msk [vmem:[%s569 + $0x28] sm:$0xff] %vm327, %v556
        %576 = vst.msk [vmem:[%s569 + $0x30] sm:$0xff] %vm327, %v561
        %577 = vst.msk [vmem:[%s569 + $0x38] sm:$0xff] %vm327, %v566
        %s578 = sand.u32 %s90, 1
        %s579 = scalar_lea.sflag [#allocation4], %s578
        %s580 = sand.u32 %s90, 1
        %s581 = smul.addr %s580, 192
        %s582 = scalar_lea.vmem [#allocation5], %s581
        // Predicated region
        $region33: #{tpu_custom_call.1} parent=27 // pred_check
          %p583 = pneg %p100
        $region34: #{tpu_custom_call.1} parent=27 // pred_check_branch
          %585 = sbr.rel (%p583) target = $region36
        $region35: #{tpu_custom_call.1} parent=27 // pred_region
          %s586 = smul.u32 8, %s24
          %s588 = ssub.s32 3072, 3072
          %589 = vsyncadd %s579, %s588
          %s590 = smul.addr %s23, 24
          %s591 = sadd.s32 %s586, %s590
          %s592 = smul.addr %s591, 128
          %s593 = scalar_lea.hbm %s2, %s592
          %s594 = sshll.u32 %s582, 4
          %s595 = int_to_ptr.vmem [resolvable:$true] %s594
          %600 = dma.vmem_to_hbm [thread:$0]  %s595, 3072, %s593, %s579, 128, 128, 8
        $region36: #{tpu_custom_call.1} parent=27 // pred_fallthru
          _
      $region28: #{tpu_custom_call.1} parent=5 // pred_fallthru
        _
      %p601 = scmp.le.s32.totalorder 2, %s14
      // Predicated region
      $region37: #{tpu_custom_call.1} parent=5 // pred_check
        %p602 = pneg %p601
      $region38: #{tpu_custom_call.1} parent=5 // pred_check_branch
        %604 = sbr.rel (%p602) target = $region40
      $region39: #{tpu_custom_call.1} parent=5 // pred_region
        %s605 = ssub.s32 %s14, 2
        // Predicated region
        $region41: #{tpu_custom_call.1} parent=39 // pred_check
          %p606 = pneg %p106
        $region42: #{tpu_custom_call.1} parent=39 // pred_check_branch
          %608 = sbr.rel (%p606) target = $region44
        $region43: #{tpu_custom_call.1} parent=39 // pred_region
          %s609 = sand.u32 %s91, 1
          %s610 = scalar_lea.sflag [#allocation4], %s609
          %s611 = sand.u32 %s91, 1
          %s612 = smul.addr %s611, 192
          %s613 = scalar_lea.vmem [#allocation5], %s612
          %614 = dma.done %s610, 3072
        $region44: #{tpu_custom_call.1} parent=39 // pred_fallthru
          _
      $region40: #{tpu_custom_call.1} parent=5 // pred_fallthru
        _
    $region6: #{tpu_custom_call.1} parent=1 // loop_footer
      %s18 = sadd.s32 1, %s14
    $region7: #{tpu_custom_call.1} parent=1 // loop_footer_branch
      %13 = sbr.rel target = $region3
    $region8: #{tpu_custom_call.1} parent=1 // loop_exit
      _
    %615 = vsyncpa [#allocation3], 1
    %s616 = scalar_lea.sflag [#allocation3], 1
    %617 = vsyncpa %s616, 1
    %618 = vsyncpa [#allocation4], 1
    %s619 = scalar_lea.sflag [#allocation4], 1
    %620 = vsyncpa %s619, 1

</llo_original>
